<compile_context>
chip_gen: v6e
topology: v6e:2x2x1
jax: 0.10.0
libtpu: 0.0.40
codegen_flags: <defaults>
</compile_context>

<pallas_src>
import functools

import jax
import jax.numpy as jnp
import numpy as np
from jax.experimental import pallas as pl
from jax.experimental.pallas import tpu as pltpu


# --------------------------------------------------------------------------
# Small helpers
# --------------------------------------------------------------------------
def _batch_tile(B):
    # Largest batch tile that divides B and keeps the block's second-minor dim
    # either a multiple of 8 or the full array extent.
    for t in (32, 16, 8):
        if B % t == 0:
            return t
    return B


def _mosaic_params(semantics, approx_bytes):
    # Explicit scoped-VMEM budget: inputs/outputs are double-buffered by the
    # pipeline, so 2x the block estimate plus headroom, clamped to [32, 64] MiB
    # (safe on v5e/v6e/v7x).
    limit = int(min(max(2 * int(approx_bytes) + (8 << 20), 32 << 20), 64 << 20))
    return pltpu.CompilerParams(dimension_semantics=semantics,
                                vmem_limit_bytes=limit)


# --------------------------------------------------------------------------
# Kernels
# --------------------------------------------------------------------------
def _conv1d_tanh_kernel(x_ref, w_ref, b_ref, o_ref, *, K):
    # x_ref: (1, L, Cin)   w_ref: (K, Cin, Cout) bf16   b_ref: (1, Cout) f32
    # o_ref: (1, Lout, Cout) bf16  (valid conv, stride 1)
    x = x_ref[0].astype(jnp.bfloat16)                       # (L, Cin)
    Lout = x.shape[0] - K + 1
    Cout = w_ref.shape[-1]
    # K accumulated MXU dots on shifted views (no im2col lane-concat copies).
    acc = jnp.zeros((Lout, Cout), jnp.float32)
    for k in range(K):                                      # K static & tiny
        acc = acc + jnp.dot(x[k:k + Lout, :], w_ref[k],
                            preferred_element_type=jnp.float32)
    o_ref[0] = jnp.tanh(acc + b_ref[...]).astype(o_ref.dtype)


def _linear_kernel(x_ref, w_ref, b_ref, o_ref):
    # x_ref: (TM, Fin)  w_ref: (Fin, Fout) bf16  b_ref: (1, Fout)  o_ref: (TM, Fout)
    x = x_ref[...].astype(jnp.bfloat16)
    y = jnp.dot(x, w_ref[...], preferred_element_type=jnp.float32) + b_ref[...]
    o_ref[...] = y.astype(o_ref.dtype)


def _bilstm_kernel(*refs, fuse_cls, split_in, unroll):
    # Inputs (time-major, one batch tile per grid step):
    #   split_in=False: x_ref (T, TB, C)            -- first LSTM layer
    #   split_in=True : xf_ref, xb_ref (T, TB, H)   -- previous bi-LSTM layer
    #   wih_ref (C, 8H) bf16, whh_ref (2H, 8H) f32 block-diag, b_ref (1, 8H) f32
    # Outputs:
    #   fuse_cls=False: hf_out, hb_out (T, TB, H) bf16   (direct per-step writes)
    #   fuse_cls=True : y_ref (T, TB, Fout) f32 = [h_f | h_b] @ W_cls + b_cls
    i = 0
    if split_in:
        xf_ref, xb_ref = refs[0], refs[1]
        i = 2
    else:
        x_ref = refs[0]
        i = 1
    wih_ref, whh_ref, b_ref = refs[i], refs[i + 1], refs[i + 2]
    i += 3
    if fuse_cls:
        cls_w_ref, cls_b_ref, y_ref, gates_scr, hf_scr, hb_scr = refs[i:]
    else:
        hf_out, hb_out, gates_scr = refs[i:]

    T, TB, H8 = gates_scr.shape
    H = H8 // 8

    # ---- hoisted input projection: one big bf16 MXU matmul over all steps ----
    w_ih = wih_ref[...]
    if split_in:
        Hp = xf_ref.shape[-1]
        xf = xf_ref[...].astype(jnp.bfloat16).reshape(T * TB, Hp)
        xb = xb_ref[...].astype(jnp.bfloat16).reshape(T * TB, Hp)
        gin = (jnp.dot(xf, w_ih[:Hp, :], preferred_element_type=jnp.float32)
               + jnp.dot(xb, w_ih[Hp:, :], preferred_element_type=jnp.float32))
    else:
        C = x_ref.shape[-1]
        xt = x_ref[...].astype(jnp.bfloat16).reshape(T * TB, C)
        gin = jnp.dot(xt, w_ih, preferred_element_type=jnp.float32)
    gates_scr[...] = (gin + b_ref[...]).reshape(T, TB, H8)

    def cell(pre, c):
        # PyTorch LSTM gate order: i, f, g, o (gate math kept in f32).
        i_g = jax.nn.sigmoid(pre[:, 0 * H:1 * H])
        f_g = jax.nn.sigmoid(pre[:, 1 * H:2 * H])
        g_g = jnp.tanh(pre[:, 2 * H:3 * H])
        o_g = jax.nn.sigmoid(pre[:, 3 * H:4 * H])
        c_new = f_g * c + i_g * g_g
        return o_g * jnp.tanh(c_new), c_new

    # ---- interleaved fwd/bwd recurrence; single fused recurrent matmul ----
    # carry h_cat = [h_fwd | h_bwd] (TB, 2H); rec = h_cat @ block-diag W_hh.
    # TODO(synk): on v7x the two directions could run on separate TensorCores.
    def step(t, carry):
        hcat, cf, cb = carry
        tb = T - 1 - t
        rec = jnp.dot(hcat, whh_ref[...], preferred_element_type=jnp.float32)
        pre_f = gates_scr[t][:, :4 * H] + rec[:, :4 * H]
        pre_b = gates_scr[tb][:, 4 * H:] + rec[:, 4 * H:]
        hf, cf = cell(pre_f, cf)
        hb, cb = cell(pre_b, cb)
        if fuse_cls:
            hf_scr[t] = hf
            hb_scr[tb] = hb
        else:
            hf_out[t] = hf.astype(hf_out.dtype)
            hb_out[tb] = hb.astype(hb_out.dtype)
        return jnp.concatenate([hf, hb], axis=-1), cf, cb

    z2 = jnp.zeros((TB, 2 * H), jnp.float32)
    z1 = jnp.zeros((TB, H), jnp.float32)
    jax.lax.fori_loop(0, T, step, (z2, z1, z1), unroll=unroll)

    if fuse_cls:
        # fused classifier epilogue: y = [h_f | h_b] @ W_cls + b_cls
        cw = cls_w_ref[...]
        y = (jnp.dot(hf_scr[...].reshape(T * TB, H), cw[:H, :],
                     preferred_element_type=jnp.float32)
             + jnp.dot(hb_scr[...].reshape(T * TB, H), cw[H:, :],
                       preferred_element_type=jnp.float32)
             + cls_b_ref[...])
        y_ref[...] = y.reshape(T, TB, -1)


# --------------------------------------------------------------------------
# Pallas wrappers
# --------------------------------------------------------------------------
def conv1d_tanh(x, w_kco, b_row, K):
    # x: (B, L, Cin); w_kco: (K, Cin, Cout) bf16; b_row: (1, Cout) f32
    B, L, Cin = x.shape
    Cout = w_kco.shape[-1]
    Lout = L - K + 1
    approx = (L * Cin * x.dtype.itemsize + int(w_kco.size) * 2 + Cout * 4
              + Lout * Cout * 2)
    return pl.pallas_call(
        functools.partial(_conv1d_tanh_kernel, K=K),
        out_shape=jax.ShapeDtypeStruct((B, Lout, Cout), jnp.bfloat16),
        grid=(B,),
        in_specs=[pl.BlockSpec((1, L, Cin), lambda b: (b, 0, 0)),
                  pl.BlockSpec((K, Cin, Cout), lambda b: (0, 0, 0)),
                  pl.BlockSpec((1, Cout), lambda b: (0, 0))],
        out_specs=pl.BlockSpec((1, Lout, Cout), lambda b: (b, 0, 0)),
        compiler_params=_mosaic_params(("parallel",), approx),
    )(x, w_kco, b_row)


def linear(x2d, w_t, b_row, out_dtype=jnp.bfloat16):
    # x2d: (N, Fin); w_t: (Fin, Fout) bf16; b_row: (1, Fout) f32
    N, Fin = x2d.shape
    Fout = w_t.shape[1]
    tm = 256 if N % 256 == 0 else N          # row-tiled when cleanly divisible
    approx = (tm * Fin * x2d.dtype.itemsize
              + int(w_t.size) * w_t.dtype.itemsize + Fout * 4
              + tm * Fout * np.dtype(out_dtype).itemsize)
    return pl.pallas_call(
        _linear_kernel,
        out_shape=jax.ShapeDtypeStruct((N, Fout), out_dtype),
        grid=(N // tm,),
        in_specs=[pl.BlockSpec((tm, Fin), lambda i: (i, 0)),
                  pl.BlockSpec((Fin, Fout), lambda i: (0, 0)),
                  pl.BlockSpec((1, Fout), lambda i: (0, 0))],
        out_specs=pl.BlockSpec((tm, Fout), lambda i: (i, 0)),
        compiler_params=_mosaic_params(("parallel",), approx),
    )(x2d, w_t, b_row)


def bilstm(x, wih_cat, whh_blk, b_cat, H, *, cls=None, inter_dtype=jnp.bfloat16):
    # x: (T, B, C) time-major, or a pair (hf_seq, hb_seq) each (T, B, H) from a
    # previous bi-LSTM layer.  cls=(W_cls (2H,Fout), b_cls (1,Fout)) fuses the
    # classifier into the epilogue (last layer only).
    split_in = isinstance(x, (tuple, list))
    x_arrays = list(x) if split_in else [x]
    T, B = x_arrays[0].shape[0], x_arrays[0].shape[1]
    TB = _batch_tile(B)
    grid = (B // TB,)
    unroll = max(1, min(4, T))
    fuse = cls is not None

    def bmap3(b):
        return (0, b, 0)

    in_specs = [pl.BlockSpec((T, TB, a.shape[-1]), bmap3) for a in x_arrays]
    in_specs += [pl.BlockSpec(wih_cat.shape, lambda b: (0, 0)),
                 pl.BlockSpec(whh_blk.shape, lambda b: (0, 0)),
                 pl.BlockSpec(b_cat.shape, lambda b: (0, 0))]
    inputs = x_arrays + [wih_cat, whh_blk, b_cat]

    scratch = [pltpu.VMEM((T, TB, 8 * H), jnp.float32)]    # hoisted x@W_ih gates
    if fuse:
        cls_w, cls_b = cls
        Fout = cls_w.shape[1]
        inputs += [cls_w, cls_b]
        in_specs += [pl.BlockSpec(cls_w.shape, lambda b: (0, 0)),
                     pl.BlockSpec(cls_b.shape, lambda b: (0, 0))]
        out_shape = jax.ShapeDtypeStruct((T, B, Fout), jnp.float32)
        out_specs = pl.BlockSpec((T, TB, Fout), bmap3)
        scratch += [pltpu.VMEM((T, TB, H), jnp.float32),   # h sequences feeding
                    pltpu.VMEM((T, TB, H), jnp.float32)]   # the fused classifier
        out_bytes = T * TB * Fout * 4
    else:
        out_shape = (jax.ShapeDtypeStruct((T, B, H), inter_dtype),
                     jax.ShapeDtypeStruct((T, B, H), inter_dtype))
        out_specs = (pl.BlockSpec((T, TB, H), bmap3),
                     pl.BlockSpec((T, TB, H), bmap3))
        out_bytes = 2 * T * TB * H * np.dtype(inter_dtype).itemsize

    approx = (sum(int(a.size) * a.dtype.itemsize for a in inputs)
              + T * TB * 8 * H * 4 + (2 * T * TB * H * 4 if fuse else 0)
              + out_bytes)

    return pl.pallas_call(
        functools.partial(_bilstm_kernel, fuse_cls=fuse, split_in=split_in,
                          unroll=unroll),
        out_shape=out_shape,
        grid=grid,
        in_specs=in_specs,
        out_specs=out_specs,
        scratch_shapes=scratch,
        compiler_params=_mosaic_params(("parallel",), approx),
    )(*inputs)


# --------------------------------------------------------------------------
# Generator module (params kept in torch layouts, forward via Pallas kernels)
# --------------------------------------------------------------------------
def _uniform(key, shape, fan_in):
    bound = 1.0 / float(np.sqrt(fan_in))
    return jax.random.uniform(key, shape, jnp.float32, -bound, bound)


class PallasGenerator:
    def __init__(self, n_conv_layers, kernel_size, n_conv_filters, hidden_size,
                 n_rnn_layers, dropout=0.5, in_channels=500, out_channels=2,
                 bidirectional=True, num_embeddings=None,
                 key=jax.random.PRNGKey(42)):
        # TODO(synk): unidirectional LSTM configuration not wired up.
        assert bidirectional, "only the bidirectional configuration is implemented"
        self.kernel_size = list(kernel_size)
        self.hidden_size = hidden_size
        self.n_rnn_layers = n_rnn_layers
        self.num_embeddings = num_embeddings
        # dropout between stacked LSTM layers is train-time only -> no-op here.

        keys = iter(jax.random.split(key, 4 + 4 * n_conv_layers + 16 * n_rnn_layers))

        if num_embeddings is not None:
            # nn.Linear(num_embeddings, in_channels)
            self.emb_w = _uniform(next(keys), (in_channels, num_embeddings), num_embeddings)
            self.emb_b = _uniform(next(keys), (in_channels,), num_embeddings)

        self.conv_params = []
        cin = in_channels
        for layer in range(n_conv_layers):
            cout, k = n_conv_filters[layer], kernel_size[layer]
            fan = cin * k
            w = _uniform(next(keys), (cout, cin, k), fan)   # torch Conv1d weight
            b = _uniform(next(keys), (cout,), fan)
            self.conv_params.append((w, b))
            cin = cout

        H = hidden_size
        self.lstm_params = []
        inp = cin
        for layer in range(n_rnn_layers):
            p = []
            for _direction in range(2):
                wih = _uniform(next(keys), (4 * H, inp), H)
                whh = _uniform(next(keys), (4 * H, H), H)
                bih = _uniform(next(keys), (4 * H,), H)
                bhh = _uniform(next(keys), (4 * H,), H)
                p += [wih, whh, bih, bhh]
            self.lstm_params.append(tuple(p))
            inp = 2 * H

        d_cls = 2 * H
        self.cls_w = _uniform(next(keys), (out_channels, d_cls), d_cls)
        self.cls_b = _uniform(next(keys), (out_channels,), d_cls)

        # ---- precomputed kernel-friendly weight layouts (done once) ----
        self.conv_kernel = []
        for (w, b), k in zip(self.conv_params, self.kernel_size):
            cout = w.shape[0]
            w_kco = jnp.transpose(w, (2, 1, 0)).astype(jnp.bfloat16)  # (K, Cin, Cout)
            self.conv_kernel.append((w_kco, b.reshape(1, cout).astype(jnp.float32), k))

        self.lstm_kernel = []
        for (wih_f, whh_f, bih_f, bhh_f, wih_b, whh_b, bih_b, bhh_b) in self.lstm_params:
            wih_cat = jnp.concatenate([wih_f.T, wih_b.T], axis=1).astype(jnp.bfloat16)
            # block-diagonal recurrent weight: [hf|hb] @ whh_blk = [hf@Wf.T | hb@Wb.T]
            whh_blk = jnp.zeros((2 * H, 8 * H), jnp.float32)
            whh_blk = whh_blk.at[:H, :4 * H].set(whh_f.T)
            whh_blk = whh_blk.at[H:, 4 * H:].set(whh_b.T)
            b_cat = jnp.concatenate([bih_f + bhh_f, bih_b + bhh_b]
                                    ).reshape(1, 8 * H).astype(jnp.float32)
            self.lstm_kernel.append((wih_cat, whh_blk, b_cat))

        self.cls_kernel = (self.cls_w.T.astype(jnp.float32),
                           self.cls_b.reshape(1, -1).astype(jnp.float32))
        if num_embeddings is not None:
            self.emb_kernel = (self.emb_w.T.astype(jnp.bfloat16),
                               self.emb_b.reshape(1, -1).astype(jnp.float32))

    # ---------------- Pallas forward ----------------
    def __call__(self, x):
        h = x.astype(jnp.float32)                       # (B, L, C_in)
        if self.num_embeddings is not None:
            h = h[:, :, -self.num_embeddings:]
            B, L, ne = h.shape
            w_t, b_row = self.emb_kernel
            h = linear(h.reshape(B * L, ne), w_t, b_row).reshape(B, L, -1)

        for (w_kco, b_row, K) in self.conv_kernel:      # conv + tanh (bf16 out)
            h = conv1d_tanh(h, w_kco, b_row, K)

        # TODO(synk): emit the last conv layer time-major directly from its
        # out_spec to drop this (bf16, single-pass) wrapper transpose.
        seq = jnp.transpose(h, (1, 0, 2))               # (T, B, C) time-major

        H = self.hidden_size
        n_layers = len(self.lstm_kernel)
        for li, (wih_cat, whh_blk, b_cat) in enumerate(self.lstm_kernel):
            cls = self.cls_kernel if li == n_layers - 1 else None
            seq = bilstm(seq, wih_cat, whh_blk, b_cat, H, cls=cls)
            # intermediate layers -> (hf_seq, hb_seq) bf16; last -> (T, B, Fout)

        y = jnp.transpose(seq, (1, 0, 2))               # (B, T, Fout), tiny
        return y[..., 0] if y.shape[-1] == 1 else y     # torch .squeeze(-1)

    # ---------------- pure-JAX f32 reference (for validation) ----------------
    def reference(self, x):
        h = x.astype(jnp.float32)
        if self.num_embeddings is not None:
            h = h[:, :, -self.num_embeddings:]
            h = h @ self.emb_w.T + self.emb_b
        for (w, b), K in zip(self.conv_params, self.kernel_size):
            B, L, Cin = h.shape
            Lout = L - K + 1
            acc = jnp.zeros((B, Lout, w.shape[0]), jnp.float32)
            for k in range(K):
                acc = acc + jnp.einsum('blc,oc->blo', h[:, k:k + Lout, :], w[:, :, k])
            h = jnp.tanh(acc + b[None, None, :])

        B, T, _ = h.shape
        H = self.hidden_size

        def run_dir(seq, wih, whh, bih, bhh, reverse):
            hs, cs = jnp.zeros((B, H)), jnp.zeros((B, H))
            outs = [None] * T
            order = range(T - 1, -1, -1) if reverse else range(T)
            for t in order:
                g = seq[:, t, :] @ wih.T + bih + hs @ whh.T + bhh
                i = jax.nn.sigmoid(g[:, :H]); f = jax.nn.sigmoid(g[:, H:2 * H])
                gg = jnp.tanh(g[:, 2 * H:3 * H]); o = jax.nn.sigmoid(g[:, 3 * H:])
                cs = f * cs + i * gg
                hs = o * jnp.tanh(cs)
                outs[t] = hs
            return jnp.stack(outs, axis=1)

        seq = h
        for (wih_f, whh_f, bih_f, bhh_f, wih_b, whh_b, bih_b, bhh_b) in self.lstm_params:
            out_f = run_dir(seq, wih_f, whh_f, bih_f, bhh_f, False)
            out_b = run_dir(seq, wih_b, whh_b, bih_b, bhh_b, True)
            seq = jnp.concatenate([out_f, out_b], axis=-1)

        y = seq @ self.cls_w.T + self.cls_b
        return y[..., 0] if y.shape[-1] == 1 else y


# --------------------------------------------------------------------------
if __name__ == "__main__":
    B, L, C_in = 2, 16, 8
    x = jax.random.normal(jax.random.PRNGKey(0), (B, L, C_in), jnp.float32)

    gen = PallasGenerator(
        n_conv_layers=2, kernel_size=[3, 3], n_conv_filters=[8, 16],
        hidden_size=32, n_rnn_layers=2, dropout=0.0,
        in_channels=C_in, out_channels=2, bidirectional=True,
        num_embeddings=None, key=jax.random.PRNGKey(42))

    y = jax.block_until_ready(gen(x))
    y_ref = gen.reference(x)

    T_out = L - 2 - 2          # two valid convs with K=3
    assert y.shape == (B, T_out, 2), y.shape
    # Pallas path uses bf16 MXU operands / bf16 inter-layer activations;
    # reference is pure f32.
    err = float(np.max(np.abs(np.asarray(y) - np.asarray(y_ref))))
    assert np.allclose(np.asarray(y), np.asarray(y_ref), atol=3e-2, rtol=3e-2), err

    print("KERNEL_OK")
</pallas_src>

<mosaic_0001>
module attributes {stable_mosaic.version = 11 : i64} {
  func.func @_conv1d_tanh_kernel(%arg0: i32, %arg1: memref<1x16x8xf32, #tpu.memory_space<vmem>>, %arg2: memref<3x8x8xbf16, #tpu.memory_space<vmem>>, %arg3: memref<1x8xf32, #tpu.memory_space<vmem>>, %arg4: memref<1x14x8xbf16, #tpu.memory_space<vmem>>) attributes {dimension_semantics = [#tpu.dimension_semantics<parallel>], iteration_bounds = array<i64: 2>, scalar_prefetch = 0 : i64, scratch_operands = 0 : i64, tpu.core_type = #tpu.core_type<tc>, window_params = [{transform_indices = @transform_0, window_bounds = array<i64: 1, 16, 8>}, {pipeline_mode = #tpu.pipeline_mode<synchronous>, transform_indices = @transform_1, window_bounds = array<i64: 3, 8, 8>}, {pipeline_mode = #tpu.pipeline_mode<synchronous>, transform_indices = @transform_2, window_bounds = array<i64: 1, 8>}, {transform_indices = @transform_3, window_bounds = array<i64: 1, 14, 8>}]} {
    %c0 = arith.constant 0 : index
    %c0_0 = arith.constant 0 : index
    %c0_1 = arith.constant 0 : index
    %0 = vector.load %arg1[%c0, %c0_0, %c0_1] : memref<1x16x8xf32, #tpu.memory_space<vmem>>, vector<1x16x8xf32>
    %1 = vector.shape_cast %0 : vector<1x16x8xf32> to vector<16x8xf32>
    %2 = arith.truncf %1 : vector<16x8xf32> to vector<16x8xbf16>
    %cst = arith.constant 0.000000e+00 : f32
    %3 = vector.broadcast %cst : f32 to vector<14x8xf32>
    %4 = vector.extract_strided_slice %2 {offsets = [0, 0], sizes = [14, 8], strides = [1, 1]} : vector<16x8xbf16> to vector<14x8xbf16>
    %c0_2 = arith.constant 0 : index
    %c0_3 = arith.constant 0 : index
    %c0_4 = arith.constant 0 : index
    %5 = vector.load %arg2[%c0_2, %c0_3, %c0_4] : memref<3x8x8xbf16, #tpu.memory_space<vmem>>, vector<1x8x8xbf16>
    %6 = vector.shape_cast %5 : vector<1x8x8xbf16> to vector<8x8xbf16>
    %cst_5 = arith.constant dense<0.000000e+00> : vector<14x8xf32>
    %7 = tpu.matmul %4, %6, %cst_5 {dimension_numbers = #tpu.dot_dimension_numbers<[1], [0], [0], [1], [0, 0, 1, 1], [], []>} : vector<14x8xbf16>, vector<8x8xbf16>, vector<14x8xf32> -> vector<14x8xf32>
    %8 = arith.addf %3, %7 : vector<14x8xf32>
    %9 = vector.extract_strided_slice %2 {offsets = [1, 0], sizes = [14, 8], strides = [1, 1]} : vector<16x8xbf16> to vector<14x8xbf16>
    %c1 = arith.constant 1 : index
    %c0_6 = arith.constant 0 : index
    %c0_7 = arith.constant 0 : index
    %10 = vector.load %arg2[%c1, %c0_6, %c0_7] : memref<3x8x8xbf16, #tpu.memory_space<vmem>>, vector<1x8x8xbf16>
    %11 = vector.shape_cast %10 : vector<1x8x8xbf16> to vector<8x8xbf16>
    %cst_8 = arith.constant dense<0.000000e+00> : vector<14x8xf32>
    %12 = tpu.matmul %9, %11, %cst_8 {dimension_numbers = #tpu.dot_dimension_numbers<[1], [0], [0], [1], [0, 0, 1, 1], [], []>} : vector<14x8xbf16>, vector<8x8xbf16>, vector<14x8xf32> -> vector<14x8xf32>
    %13 = arith.addf %8, %12 : vector<14x8xf32>
    %14 = vector.extract_strided_slice %2 {offsets = [2, 0], sizes = [14, 8], strides = [1, 1]} : vector<16x8xbf16> to vector<14x8xbf16>
    %c2 = arith.constant 2 : index
    %c0_9 = arith.constant 0 : index
    %c0_10 = arith.constant 0 : index
    %15 = vector.load %arg2[%c2, %c0_9, %c0_10] : memref<3x8x8xbf16, #tpu.memory_space<vmem>>, vector<1x8x8xbf16>
    %16 = vector.shape_cast %15 : vector<1x8x8xbf16> to vector<8x8xbf16>
    %cst_11 = arith.constant dense<0.000000e+00> : vector<14x8xf32>
    %17 = tpu.matmul %14, %16, %cst_11 {dimension_numbers = #tpu.dot_dimension_numbers<[1], [0], [0], [1], [0, 0, 1, 1], [], []>} : vector<14x8xbf16>, vector<8x8xbf16>, vector<14x8xf32> -> vector<14x8xf32>
    %18 = arith.addf %13, %17 : vector<14x8xf32>
    %c0_12 = arith.constant 0 : index
    %c0_13 = arith.constant 0 : index
    %19 = vector.load %arg3[%c0_12, %c0_13] : memref<1x8xf32, #tpu.memory_space<vmem>>, vector<1x8xf32>
    %20 = vector.broadcast %19 : vector<1x8xf32> to vector<14x8xf32>
    %21 = arith.addf %18, %20 : vector<14x8xf32>
    %22 = math.tanh %21 : vector<14x8xf32>
    %23 = arith.truncf %22 : vector<14x8xf32> to vector<14x8xbf16>
    %c0_14 = arith.constant 0 : index
    %c0_15 = arith.constant 0 : index
    %c0_16 = arith.constant 0 : index
    %24 = vector.load %arg4[%c0_14, %c0_15, %c0_16] : memref<1x14x8xbf16, #tpu.memory_space<vmem>>, vector<1x14x8xbf16>
    %25 = vector.shape_cast %24 : vector<1x14x8xbf16> to vector<14x8xbf16>
    %26 = vector.shape_cast %23 : vector<14x8xbf16> to vector<1x14x8xbf16>
    tpu.vector_store %arg4[%c0_14, %c0_15, %c0_16], %26 {strides = array<i32>} : memref<1x14x8xbf16, #tpu.memory_space<vmem>>, vector<1x14x8xbf16>,
    return
  }
  func.func @transform_0(%arg0: i32) -> (i32, i32, i32) {
    %c0_i32 = arith.constant 0 : i32
    %c0_i32_0 = arith.constant 0 : i32
    %c0_i32_1 = arith.constant 0 : i32
    return %arg0, %c0_i32, %c0_i32_0 : i32, i32, i32
  }
  func.func @transform_1(%arg0: i32) -> (i32, i32, i32) {
    %c0_i32 = arith.constant 0 : i32
    %c0_i32_0 = arith.constant 0 : i32
    %c0_i32_1 = arith.constant 0 : i32
    %c0_i32_2 = arith.constant 0 : i32
    return %c0_i32, %c0_i32_0, %c0_i32_1 : i32, i32, i32
  }
  func.func @transform_2(%arg0: i32) -> (i32, i32) {
    %c0_i32 = arith.constant 0 : i32
    %c0_i32_0 = arith.constant 0 : i32
    %c0_i32_1 = arith.constant 0 : i32
    return %c0_i32, %c0_i32_0 : i32, i32
  }
  func.func @transform_3(%arg0: i32) -> (i32, i32, i32) {
    %c0_i32 = arith.constant 0 : i32
    %c0_i32_0 = arith.constant 0 : i32
    %c0_i32_1 = arith.constant 0 : i32
    return %arg0, %c0_i32, %c0_i32_0 : i32, i32, i32
  }
}

</mosaic_0001>

<llo_original>
// kernel: tpu_custom_call.1
$region0: #{tpu_custom_call.1}
  #allocation0 [shape = 'u32[]', space=smem, size = 0x4, offset = 0x4, fixed_abs, tag = 'smem constant byte address 0x4 - core index']
  #allocation1 [shape = 'u32[144,128]{1,0:T(1,128)}', space=vmem, size = 0x12000, scoped, tag = 'internal scratch']
  %s0 = inlined_call_operand.vmem [shape: f32[2,16,8], index: 0, kind: input, shape index: {}]
  %s1 = inlined_call_operand.vmem [shape: bf16[3,8,8], index: 1, kind: input, shape index: {}]
  %s2 = inlined_call_operand.vmem [shape: f32[1,8], index: 2, kind: input, shape index: {}]
  %s3 = inlined_call_operand.vmem [shape: bf16[2,14,8], index: 3, kind: output, shape index: {}]
  %s4 = sld [smem:[#allocation0]]
  $region45: #{tpu_custom_call.1} parent=0
    _
  %s6 = ssub.s32 1, %s4
  %s7 = scalar_select 0, %s6, %s4
  loop: start=0, step=1, limit=4
  $region2: #{tpu_custom_call.1} parent=0 // loop_pre_header
    _
  $region3: #{tpu_custom_call.1} parent=0 // loop_header
    %s9 = sphi 0, %s13
    %p10 = scmp.ge.s32.totalorder %s9, 4
    %s19 = sphi 0, %s21
    %s22 = sphi 0, %s19
    %s23 = sphi 0, %s22
    %s39 = sphi 0, %s23
    %s43 = sphi 0, %s43
    %s45 = sphi 0, %s43
    %s46 = sphi 0, %s45
    %s60 = sphi 0, %s46
    %s64 = sphi 0, %s64
    %s66 = sphi 0, %s64
    %s67 = sphi 0, %s66
    %s81 = sphi 0, %s67
    %s87 = sphi 0, %s89
    %s90 = sphi 0, %s87
    %s91 = sphi 0, %s90
    %s107 = sphi 0, %s91
  $region4: #{tpu_custom_call.1} parent=0 // loop_header_branch
    %12 = sbr.rel (%p10) target = $region8
  $region5: #{tpu_custom_call.1} parent=0 // loop_body
    %s14 = ssub.s32 %s9, 1
    %s15 = ssub.s32 %s9, 2
    %s16 = sadd.s32 %s9, 1
    %s17 = ssub.s32 %s9, %s16
    %p18 = scmp.eq.s32.totalorder %s17, 0
    %s20 = sadd.s32 %s19, 1
    %s21 = scalar_select %p18, %s19, %s20
    %p24 = pneg %p18
    %p25 = scmp.eq.s32.totalorder %s9, 1
    %p26 = por %p24, %p25
    %p27 = scmp.ne.s32.totalorder %s19, %s22
    %p28 = scmp.eq.s32.totalorder %s9, 0
    %p29 = por %p27, %p28
    %p30 = scmp.ne.s32.totalorder %s19, %s22
    %p31 = scmp.eq.s32.totalorder %s14, 1
    %p32 = por %p30, %p31
    %p33 = scmp.ne.s32.totalorder %s22, %s23
    %p34 = scmp.eq.s32.totalorder %s14, 0
    %p35 = por %p33, %p34
    %p36 = scmp.ne.s32.totalorder %s22, %s23
    %p37 = scmp.eq.s32.totalorder %s15, 1
    %p38 = por %p36, %p37
    %p40 = scmp.ne.s32.totalorder %s23, %s39
    %p41 = scmp.eq.s32.totalorder %s15, 0
    %p42 = por %p40, %p41
    %s44 = sadd.s32 %s43, 1
    %p47 = scmp.eq.s32.totalorder %s9, 1
    %p48 = scmp.ne.s32.totalorder %s43, %s45
    %p49 = scmp.eq.s32.totalorder %s9, 0
    %p50 = por %p48, %p49
    %p51 = scmp.ne.s32.totalorder %s43, %s45
    %p52 = scmp.eq.s32.totalorder %s14, 1
    %p53 = por %p51, %p52
    %p54 = scmp.ne.s32.totalorder %s45, %s46
    %p55 = scmp.eq.s32.totalorder %s14, 0
    %p56 = por %p54, %p55
    %p57 = scmp.ne.s32.totalorder %s45, %s46
    %p58 = scmp.eq.s32.totalorder %s15, 1
    %p59 = por %p57, %p58
    %p61 = scmp.ne.s32.totalorder %s46, %s60
    %p62 = scmp.eq.s32.totalorder %s15, 0
    %p63 = por %p61, %p62
    %s65 = sadd.s32 %s64, 1
    %p68 = scmp.eq.s32.totalorder %s9, 1
    %p69 = scmp.ne.s32.totalorder %s64, %s66
    %p70 = scmp.eq.s32.totalorder %s9, 0
    %p71 = por %p69, %p70
    %p72 = scmp.ne.s32.totalorder %s64, %s66
    %p73 = scmp.eq.s32.totalorder %s14, 1
    %p74 = por %p72, %p73
    %p75 = scmp.ne.s32.totalorder %s66, %s67
    %p76 = scmp.eq.s32.totalorder %s14, 0
    %p77 = por %p75, %p76
    %p78 = scmp.ne.s32.totalorder %s66, %s67
    %p79 = scmp.eq.s32.totalorder %s15, 1
    %p80 = por %p78, %p79
    %p82 = scmp.ne.s32.totalorder %s67, %s81
    %p83 = scmp.eq.s32.totalorder %s15, 0
    %p84 = por %p82, %p83
    %s85 = ssub.s32 %s9, %s16
    %p86 = scmp.eq.s32.totalorder %s85, 0
    %s88 = sadd.s32 %s87, 1
    %s89 = scalar_select %p86, %s87, %s88
    %p92 = pneg %p86
    %p93 = scmp.eq.s32.totalorder %s9, 1
    %p94 = por %p92, %p93
    %p95 = scmp.ne.s32.totalorder %s87, %s90
    %p96 = scmp.eq.s32.totalorder %s9, 0
    %p97 = por %p95, %p96
    %p98 = scmp.ne.s32.totalorder %s87, %s90
    %p99 = scmp.eq.s32.totalorder %s14, 1
    %p100 = por %p98, %p99
    %p101 = scmp.ne.s32.totalorder %s90, %s91
    %p102 = scmp.eq.s32.totalorder %s14, 0
    %p103 = por %p101, %p102
    %p104 = scmp.ne.s32.totalorder %s90, %s91
    %p105 = scmp.eq.s32.totalorder %s15, 1
    %p106 = por %p104, %p105
    %p108 = scmp.ne.s32.totalorder %s91, %s107
    %p109 = scmp.eq.s32.totalorder %s15, 0
    %p110 = por %p108, %p109
    %p111 = scmp.le.s32.totalorder 1, %s9
    %p112 = scmp.lt.s32.totalorder %s9, 3
    %p113 = pnand %p111, %p112
    %p114 = pneg %p113
    // Predicated region
    $region9: #{tpu_custom_call.1} parent=5 // pred_check
      _
    $region10: #{tpu_custom_call.1} parent=5 // pred_check_branch
      %116 = sbr.rel (%p113) target = $region12
    $region11: #{tpu_custom_call.1} parent=5 // pred_region
      %s117 = ssub.s32 %s9, 1
      // Predicated region
      $region13: #{tpu_custom_call.1} parent=11 // pred_check
        %p118 = pneg %p56
      $region14: #{tpu_custom_call.1} parent=11 // pred_check_branch
        %120 = sbr.rel (%p118) target = $region16
      $region15: #{tpu_custom_call.1} parent=11 // pred_region
        _
      $region16: #{tpu_custom_call.1} parent=11 // pred_fallthru
        _
      // Predicated region
      $region17: #{tpu_custom_call.1} parent=11 // pred_check
        %p121 = pneg %p77
      $region18: #{tpu_custom_call.1} parent=11 // pred_check_branch
        %123 = sbr.rel (%p121) target = $region20
      $region19: #{tpu_custom_call.1} parent=11 // pred_region
        _
      $region20: #{tpu_custom_call.1} parent=11 // pred_fallthru
        _
    $region12: #{tpu_custom_call.1} parent=5 // pred_fallthru
      _
    %p124 = scmp.lt.s32.totalorder %s9, 2
    // Predicated region
    $region21: #{tpu_custom_call.1} parent=5 // pred_check
      %p125 = pneg %p124
    $region22: #{tpu_custom_call.1} parent=5 // pred_check_branch
      %127 = sbr.rel (%p125) target = $region24
    $region23: #{tpu_custom_call.1} parent=5 // pred_region
      // Predicated region
      $region25: #{tpu_custom_call.1} parent=23 // pred_check
        %p128 = pneg %p29
      $region26: #{tpu_custom_call.1} parent=23 // pred_check_branch
        %130 = sbr.rel (%p128) target = $region28
      $region27: #{tpu_custom_call.1} parent=23 // pred_region
        %p131 = scmp.lt.s32.totalorder %s9, 1
        %s132 = scalar_select %p131, %s9, 1
        %s133 = smul.addr %s132, 2
        %s134 = smul.addr %s133, 8
        %s135 = scalar_lea.vmem %s0, %s134
      $region28: #{tpu_custom_call.1} parent=23 // pred_fallthru
        _
    $region24: #{tpu_custom_call.1} parent=5 // pred_fallthru
      _
    %p136 = scmp.le.s32.totalorder 1, %s9
    %p137 = scmp.lt.s32.totalorder %s9, 3
    %p138 = pnand %p136, %p137
    %p139 = pneg %p138
    // Predicated region
    $region29: #{tpu_custom_call.1} parent=5 // pred_check
      _
    $region30: #{tpu_custom_call.1} parent=5 // pred_check_branch
      %141 = sbr.rel (%p138) target = $region32
    $region31: #{tpu_custom_call.1} parent=5 // pred_region
      %s142 = ssub.s32 %s9, 1
      %p143 = scmp.lt.s32.totalorder %s14, 1
      %s144 = scalar_select %p143, %s14, 1
      %s145 = smul.addr %s144, 2
      %s146 = smul.addr %s145, 8
      %s147 = scalar_lea.vmem %s0, %s146
      %p148 = pneg %p35
      %p149 = pneg %p32
      %p150 = pneg %p56
      %p151 = pneg %p53
      %p152 = pneg %p77
      %p153 = pneg %p74
      %p154 = pneg %p103
      %p155 = pneg %p100
      %p156 = scmp.lt.s32.totalorder %s14, 1
      %s157 = scalar_select %p156, %s14, 1
      %s158 = smul.addr %s157, 2
      %s159 = smul.addr %s158, 4
      %s160 = scalar_lea.vmem %s3, %s159
      %p161 = scmp.lt.s32.totalorder %s14, 1
      %s162 = scalar_select %p161, %s14, 1
      %s163 = smul.addr %s162, 2
      %s164 = smul.addr %s163, 8
      %s165 = scalar_lea.vmem %s0, %s164
      %p166 = scmp.lt.s32.totalorder %s14, 1
      %s167 = scalar_select %p166, %s14, 1
      %s168 = smul.addr %s167, 2
      %s169 = smul.addr %s168, 4
      %s170 = scalar_lea.vmem %s3, %s169
      %v172 = vld [vmem:[%s165] sm:$0xff]
      %v173 = vld [vmem:[%s165 + $0x8] sm:$0xff]
      %v174 = vpack.c.bf16 %v173, %v172
      %v175 = vld [vmem:[%s1] sm:$0xf]
      %s176 = scalar_lea.vmem %s1, 4
      %v177 = vld [vmem:[%s176] sm:$0xf]
      %v179 = vshrl.u32 %v174, 16
      %v181 = vshll.u32 %v174, 16
      %v183 = vrot.slane %v181, 1
      %v184 = vor.u32 %v179, %v183
      %vm185 = vcmask 64512
      %v187 = vsel %vm185, %v184, 0
      %vm189 = vcmask 1043456
      %v191 = vsel %vm189, %v177, 0
      %193 = vmatprep.subr.bf16.mxu0 0
      %194 = vmatpush1.bf16.msra.mxu0 0
      %195 = vmatprep.subr.bf16.mxu0 0
      %196 = vmatpush1.bf16.msra.mxu0 0
      %197 = vmatprep.subr.bf16.mxu0 0
      %198 = vmatpush1.bf16.msra.mxu0 0
      %199 = vmatprep.subr.bf16.mxu0 0
      %200 = vmatpush1.bf16.msra.mxu0 0
      %201 = vmatprep.subr.bf16.mxu0 0
      %202 = vmatpush1.bf16.msra.mxu0 0
      %203 = vmatprep.subr.bf16.mxu0 0
      %204 = vmatpush1.bf16.msra.mxu0 0
      %205 = vmatprep.subr.bf16.mxu0 0
      %206 = vmatpush1.bf16.msra.mxu0 0
      %207 = vmatprep.subr.bf16.mxu0 0
      %208 = vmatpush1.bf16.msra.mxu0 %v191
      %209 = vmatprep.subr.bf16.mxu0 0
      %210 = vmatpush2.bf16.msra.mxu0 0
      %211 = vmatprep.subr.bf16.mxu0 0
      %212 = vmatpush2.bf16.msra.mxu0 0
      %213 = vmatprep.subr.bf16.mxu0 0
      %214 = vmatpush2.bf16.msra.mxu0 0
      %215 = vmatprep.subr.bf16.mxu0 0
      %216 = vmatpush2.bf16.msra.mxu0 0
      %217 = vmatprep.subr.bf16.mxu0 0
      %218 = vmatpush2.bf16.msra.mxu0 0
      %219 = vmatprep.subr.bf16.mxu0 0
      %220 = vmatpush2.bf16.msra.mxu0 0
      %221 = vmatprep.subr.bf16.mxu0 0
      %222 = vmatpush2.bf16.msra.mxu0 0
      %223 = vmatprep.subr.bf16.mxu0 0
      %224 = vmatpush2.bf16.msra.mxu0 0
      %225 = vmatprep.mubr.bf16.mxu0 0
      %226 = vmatmul.mubr.bf16.gmra.mxu0 %v187
      %v227 = vpop.f32.mrf.mxu0
      %v228 = vadd.f32 0.0, %v227
      %v229 = vpop.f32.mrf.mxu0
      %v230 = vpop.f32.mrf.mxu0
      %v231 = vadd.f32 0.0, %v230
      %v232 = vpop.f32.mrf.mxu0
      %233 = vdwg.mxu0
      %v234 = vsel %vm185, %v174, 0
      %v237 = vsel %vm189, %v175, 0
      %239 = vmatprep.subr.bf16.mxu0 0
      %240 = vmatpush1.bf16.msra.mxu0 0
      %241 = vmatprep.subr.bf16.mxu0 0
      %242 = vmatpush1.bf16.msra.mxu0 0
      %243 = vmatprep.subr.bf16.mxu0 0
      %244 = vmatpush1.bf16.msra.mxu0 0
      %245 = vmatprep.subr.bf16.mxu0 0
      %246 = vmatpush1.bf16.msra.mxu0 0
      %247 = vmatprep.subr.bf16.mxu0 0
      %248 = vmatpush1.bf16.msra.mxu0 0
      %249 = vmatprep.subr.bf16.mxu0 0
      %250 = vmatpush1.bf16.msra.mxu0 0
      %251 = vmatprep.subr.bf16.mxu0 0
      %252 = vmatpush1.bf16.msra.mxu0 0
      %253 = vmatprep.subr.bf16.mxu0 0
      %254 = vmatpush1.bf16.msra.mxu0 %v237
      %255 = vmatprep.subr.bf16.mxu0 0
      %256 = vmatpush2.bf16.msra.mxu0 0
      %257 = vmatprep.subr.bf16.mxu0 0
      %258 = vmatpush2.bf16.msra.mxu0 0
      %259 = vmatprep.subr.bf16.mxu0 0
      %260 = vmatpush2.bf16.msra.mxu0 0
      %261 = vmatprep.subr.bf16.mxu0 0
      %262 = vmatpush2.bf16.msra.mxu0 0
      %263 = vmatprep.subr.bf16.mxu0 0
      %264 = vmatpush2.bf16.msra.mxu0 0
      %265 = vmatprep.subr.bf16.mxu0 0
      %266 = vmatpush2.bf16.msra.mxu0 0
      %267 = vmatprep.subr.bf16.mxu0 0
      %268 = vmatpush2.bf16.msra.mxu0 0
      %269 = vmatprep.subr.bf16.mxu0 0
      %270 = vmatpush2.bf16.msra.mxu0 0
      %271 = vmatprep.mubr.bf16.mxu0 0
      %272 = vmatmul.mubr.bf16.gmra.mxu0 %v234
      %v273 = vpop.f32.mrf.mxu0
      %v274 = vadd.f32 %v228, %v273
      %v275 = vpop.f32.mrf.mxu0
      %v276 = vpop.f32.mrf.mxu0
      %v277 = vadd.f32 %v231, %v276
      %v278 = vpop.f32.mrf.mxu0
      %279 = vdwg.mxu0
      %s280 = scalar_lea.vmem %s1, 8
      %v281 = vld [vmem:[%s280] sm:$0xf]
      %v283 = vrot.slane %v174, 1
      %v285 = vsel %vm185, %v283, 0
      %v288 = vsel %vm189, %v281, 0
      %290 = vmatprep.subr.bf16.mxu0 0
      %291 = vmatpush1.bf16.msra.mxu0 0
      %292 = vmatprep.subr.bf16.mxu0 0
      %293 = vmatpush1.bf16.msra.mxu0 0
      %294 = vmatprep.subr.bf16.mxu0 0
      %295 = vmatpush1.bf16.msra.mxu0 0
      %296 = vmatprep.subr.bf16.mxu0 0
      %297 = vmatpush1.bf16.msra.mxu0 0
      %298 = vmatprep.subr.bf16.mxu0 0
      %299 = vmatpush1.bf16.msra.mxu0 0
      %300 = vmatprep.subr.bf16.mxu0 0
      %301 = vmatpush1.bf16.msra.mxu0 0
      %302 = vmatprep.subr.bf16.mxu0 0
      %303 = vmatpush1.bf16.msra.mxu0 0
      %304 = vmatprep.subr.bf16.mxu0 0
      %305 = vmatpush1.bf16.msra.mxu0 %v288
      %306 = vmatprep.subr.bf16.mxu0 0
      %307 = vmatpush2.bf16.msra.mxu0 0
      %308 = vmatprep.subr.bf16.mxu0 0
      %309 = vmatpush2.bf16.msra.mxu0 0
      %310 = vmatprep.subr.bf16.mxu0 0
      %311 = vmatpush2.bf16.msra.mxu0 0
      %312 = vmatprep.subr.bf16.mxu0 0
      %313 = vmatpush2.bf16.msra.mxu0 0
      %314 = vmatprep.subr.bf16.mxu0 0
      %315 = vmatpush2.bf16.msra.mxu0 0
      %316 = vmatprep.subr.bf16.mxu0 0
      %317 = vmatpush2.bf16.msra.mxu0 0
      %318 = vmatprep.subr.bf16.mxu0 0
      %319 = vmatpush2.bf16.msra.mxu0 0
      %320 = vmatprep.subr.bf16.mxu0 0
      %321 = vmatpush2.bf16.msra.mxu0 0
      %322 = vmatprep.mubr.bf16.mxu0 0
      %323 = vmatmul.mubr.bf16.gmra.mxu0 %v285
      %v324 = vpop.f32.mrf.mxu0
      %v325 = vadd.f32 0.0, %v324
      %v326 = vpop.f32.mrf.mxu0
      %v327 = vpop.f32.mrf.mxu0
      %v328 = vadd.f32 0.0, %v327
      %v329 = vpop.f32.mrf.mxu0
      %330 = vdwg.mxu0
      %v331 = vadd.f32 %v274, %v325
      %v332 = vadd.f32 %v277, %v328
      %v333 = vld [vmem:[%s2] sm:$0x1]
      %v335 = vlaneseq
      %v336 = vshrl.u32 %v335, 7
      %v337 = vsub.s32 0, %v336
      %v338 = vrot.slane %v333, %v337
      %v340 = vadd.f32 %v331, %v338
      %v341 = vadd.f32 %v332, %v338
      %v342 = vtanh.pop %v340
      %v343 = vtanh.pop %v341
      %v344 = vpack.c.bf16 %v343, %v342
      %v346 = vunpack.c.l.b16 %v344
      %v347 = vunpack.c.h.b16 %v344
      %v348 = vpack.c.b16 %v346, %v346
      %v349 = vpack.c.b16 %v347, %v347
      %vm352 = vcmask 60416
      %353 = vst.msk [vmem:[%s170] sm:$0xf] %vm352, %v348
      %vm354 = vcmask 59392
      %355 = vst.msk [vmem:[%s170 + $0x4] sm:$0x7] %vm354, %v349
      %p356 = scmp.lt.s32.totalorder %s14, 1
      %s357 = scalar_select %p356, %s14, 1
      %s358 = smul.addr %s357, 2
      %s359 = smul.addr %s358, 4
      %s360 = scalar_lea.vmem %s3, %s359
      // Predicated region
      $region33: #{tpu_custom_call.1} parent=31 // pred_check
        %p361 = pneg %p100
      $region34: #{tpu_custom_call.1} parent=31 // pred_check_branch
        %363 = sbr.rel (%p361) target = $region36
      $region35: #{tpu_custom_call.1} parent=31 // pred_region
        _
      $region36: #{tpu_custom_call.1} parent=31 // pred_fallthru
        _
    $region32: #{tpu_custom_call.1} parent=5 // pred_fallthru
      _
    %p364 = scmp.le.s32.totalorder 2, %s9
    // Predicated region
    $region37: #{tpu_custom_call.1} parent=5 // pred_check
      %p365 = pneg %p364
    $region38: #{tpu_custom_call.1} parent=5 // pred_check_branch
      %367 = sbr.rel (%p365) target = $region40
    $region39: #{tpu_custom_call.1} parent=5 // pred_region
      %s368 = ssub.s32 %s9, 2
      // Predicated region
      $region41: #{tpu_custom_call.1} parent=39 // pred_check
        %p369 = pneg %p106
      $region42: #{tpu_custom_call.1} parent=39 // pred_check_branch
        %371 = sbr.rel (%p369) target = $region44
      $region43: #{tpu_custom_call.1} parent=39 // pred_region
        %p372 = scmp.lt.s32.totalorder %s15, 1
        %s373 = scalar_select %p372, %s15, 1
        %s374 = smul.addr %s373, 2
        %s375 = smul.addr %s374, 4
        %s376 = scalar_lea.vmem %s3, %s375
      $region44: #{tpu_custom_call.1} parent=39 // pred_fallthru
        _
    $region40: #{tpu_custom_call.1} parent=5 // pred_fallthru
      _
  $region6: #{tpu_custom_call.1} parent=0 // loop_footer
    %s13 = sadd.s32 1, %s9
  $region7: #{tpu_custom_call.1} parent=0 // loop_footer_branch
    %8 = sbr.rel target = $region3
  $region8: #{tpu_custom_call.1} parent=0 // loop_exit
    _

</llo_original>
